<compile_context>
chip_gen: v5e
topology: v5e:2x2
jax: 0.10.0
libtpu: 0.0.40
codegen_flags: <defaults>
</compile_context>

<pallas_src>
import functools

import jax
import jax.numpy as jnp
from jax.experimental import pallas as pl
from jax.experimental.pallas import tpu as pltpu

_LANE = 128          # TPU lane width; out_proj padded from 2 -> 128 cols
_SUBLANE = 8
_VMEM_LIMIT = 32 * 1024 * 1024   # safe on v5e/v6e (128 MiB) and v7x (64 MiB)


def _round_up(x, m):
    return (x + m - 1) // m * m


def _pad_rows(a, n_pad):
    n = a.shape[0]
    if n_pad == n:
        return a
    pad = [(0, n_pad - n)] + [(0, 0)] * (a.ndim - 1)
    return jnp.pad(a, pad)


@functools.lru_cache(maxsize=1)
def _single_buffering_supported():
    """Probe whether pipeline_mode=pl.Buffered(1) lowers on this jax/libtpu."""
    try:
        def _k(w_ref, x_ref, o_ref):
            o_ref[...] = x_ref[...] + w_ref[...]

        w = jnp.ones((_SUBLANE, _LANE), jnp.float32)
        x = jnp.ones((2 * _SUBLANE, _LANE), jnp.float32)
        out = pl.pallas_call(
            _k,
            out_shape=jax.ShapeDtypeStruct((2 * _SUBLANE, _LANE), jnp.float32),
            grid=(2,),
            in_specs=[
                pl.BlockSpec((_SUBLANE, _LANE), lambda i: (0, 0),
                             pipeline_mode=pl.Buffered(1)),
                pl.BlockSpec((_SUBLANE, _LANE), lambda i: (i, 0)),
            ],
            out_specs=pl.BlockSpec((_SUBLANE, _LANE), lambda i: (i, 0)),
        )(w, x)
        jax.block_until_ready(out)
        return True
    except Exception:  # noqa: BLE001 - fall back to default double-buffering
        return False


def _pinned_spec(shape):
    """Spec for a grid-invariant operand; single-buffered when supported."""
    if _single_buffering_supported():
        return pl.BlockSpec(shape, lambda i: (0, 0), pipeline_mode=pl.Buffered(1))
    return pl.BlockSpec(shape, lambda i: (0, 0))


def _default_bf16_tanh():
    # bf16 EUP/VPU exist on v6e / v7x; keep f32 tanh on v5e and older chips.
    try:
        kind = jax.devices()[0].device_kind.lower()
    except Exception:  # noqa: BLE001
        return False
    return ("v6" in kind) or ("v7" in kind) or ("7x" in kind)


# ----------------------------------------------------------------------------
# Shared head math (dropout(eval)=id -> dense -> tanh -> dropout -> out_proj)
# ----------------------------------------------------------------------------
def _head_logits(x_ref, w1_ref, b1_ref, w2_ref, b2_ref, bf16_tanh):
    # x : [TM, 2H] bf16     w1: [2H, H] bf16     b1: [1, H] f32
    # w2: [H, 128] bf16 (cols 0:2 real)          b2: [1, 128] f32 (cols 0:2 real)
    h = jnp.dot(x_ref[...], w1_ref[...],
                preferred_element_type=jnp.float32) + b1_ref[...]
    if bf16_tanh:
        h = jnp.tanh(h.astype(jnp.bfloat16))      # bf16 EUP tanh (v6e / v7x)
    else:
        h = jnp.tanh(h).astype(jnp.bfloat16)      # f32 EUP tanh (v5e-safe)
    return (jnp.dot(h, w2_ref[...], preferred_element_type=jnp.float32)
            + b2_ref[...])                         # [TM, 128] f32


# ----------------------------------------------------------------------------
# Kernels
# ----------------------------------------------------------------------------
def _infer_kernel(x_ref, w1_ref, b1_ref, w2_ref, b2_ref, logits_ref, *,
                  bf16_tanh):
    logits_ref[...] = _head_logits(x_ref, w1_ref, b1_ref, w2_ref, b2_ref,
                                   bf16_tanh)


def _train_kernel(x_ref, w1_ref, b1_ref, w2_ref, b2_ref, labels_ref,
                  prob_ref, loss_ref, *, bf16_tanh):
    logits = _head_logits(x_ref, w1_ref, b1_ref, w2_ref, b2_ref, bf16_tanh)

    # 2-class softmax / cross-entropy on narrow [TM, 1] columns.
    lane = jax.lax.broadcasted_iota(jnp.int32, logits.shape, 1)
    l0 = jnp.sum(jnp.where(lane == 0, logits, 0.0), axis=-1, keepdims=True)
    l1 = jnp.sum(jnp.where(lane == 1, logits, 0.0), axis=-1, keepdims=True)

    m = jnp.maximum(l0, l1)
    e0 = jnp.exp(l0 - m)
    e1 = jnp.exp(l1 - m)
    denom = e0 + e1
    inv = 1.0 / denom                      # exact division: torch.softmax parity
    p0 = e0 * inv
    p1 = e1 * inv
    prob_ref[...] = jnp.where(lane == 0, p0, jnp.where(lane == 1, p1, 0.0))

    # CrossEntropy per row: lse - logits[label]; mean reduction in the wrapper.
    lse = m + jnp.log(denom)
    picked = jnp.where(labels_ref[...] == 1, l1, l0)   # labels: [TM, 1] int32
    loss_ref[...] = lse - picked                        # [TM, 1] f32


# ----------------------------------------------------------------------------
# pallas_call wrappers
# ----------------------------------------------------------------------------
def _head_infer(x_bf16, w1, b1, w2p, b2p, *, tm, bf16_tanh):
    n_pad, h2 = x_bf16.shape
    hidden = w1.shape[1]
    grid = (pl.cdiv(n_pad, tm),)
    kernel = functools.partial(_infer_kernel, bf16_tanh=bf16_tanh)
    return pl.pallas_call(
        kernel,
        out_shape=jax.ShapeDtypeStruct((n_pad, _LANE), jnp.float32),
        grid=grid,
        in_specs=[
            pl.BlockSpec((tm, h2), lambda i: (i, 0)),
            _pinned_spec((h2, hidden)),
            _pinned_spec((1, hidden)),
            _pinned_spec((hidden, _LANE)),
            _pinned_spec((1, _LANE)),
        ],
        out_specs=pl.BlockSpec((tm, _LANE), lambda i: (i, 0)),
        compiler_params=pltpu.CompilerParams(
            dimension_semantics=("parallel",),
            vmem_limit_bytes=_VMEM_LIMIT,
        ),
    )(x_bf16, w1, b1, w2p, b2p)


def _head_train(x_bf16, w1, b1, w2p, b2p, labels2d, *, tm, bf16_tanh):
    n_pad, h2 = x_bf16.shape
    hidden = w1.shape[1]
    grid = (pl.cdiv(n_pad, tm),)
    kernel = functools.partial(_train_kernel, bf16_tanh=bf16_tanh)
    return pl.pallas_call(
        kernel,
        out_shape=(
            jax.ShapeDtypeStruct((n_pad, _LANE), jnp.float32),   # prob slab
            jax.ShapeDtypeStruct((n_pad, 1), jnp.float32),       # per-row NLL
        ),
        grid=grid,
        in_specs=[
            pl.BlockSpec((tm, h2), lambda i: (i, 0)),
            _pinned_spec((h2, hidden)),
            _pinned_spec((1, hidden)),
            _pinned_spec((hidden, _LANE)),
            _pinned_spec((1, _LANE)),
            pl.BlockSpec((tm, 1), lambda i: (i, 0)),             # labels
        ],
        out_specs=(
            pl.BlockSpec((tm, _LANE), lambda i: (i, 0)),
            pl.BlockSpec((tm, 1), lambda i: (i, 0)),
        ),
        compiler_params=pltpu.CompilerParams(
            dimension_semantics=("parallel",),     # no cross-tile dependency
            vmem_limit_bytes=_VMEM_LIMIT,
        ),
    )(x_bf16, w1, b1, w2p, b2p, labels2d)


# ----------------------------------------------------------------------------
# Model wrapper (glue in plain JAX)
# ----------------------------------------------------------------------------
class PallasCloneModel:
    def __init__(self, key, vocab_size, hidden_size, block_size, tm=512,
                 bf16_tanh=None):
        self.hidden_size = hidden_size
        self.block_size = block_size
        self.tm = tm
        self.bf16_tanh = _default_bf16_tanh() if bf16_tanh is None else bf16_tanh
        k_emb, k_w1, k_b1, k_w2, k_b2 = jax.random.split(key, 5)

        # encoder stub parameters
        self.embed = jax.random.normal(k_emb, (vocab_size, hidden_size),
                                       jnp.float32) * 0.02

        # RobertaClassificationHead parameters
        #   dense:    Linear(2H -> H)
        #   out_proj: Linear(H -> 2), lane-padded to 128 output columns
        lim1 = 1.0 / jnp.sqrt(2.0 * hidden_size)
        lim2 = 1.0 / jnp.sqrt(1.0 * hidden_size)
        w1 = jax.random.uniform(k_w1, (2 * hidden_size, hidden_size),
                                jnp.float32, -lim1, lim1)
        b1 = jax.random.uniform(k_b1, (1, hidden_size), jnp.float32, -lim1, lim1)
        w2 = jax.random.uniform(k_w2, (hidden_size, 2), jnp.float32, -lim2, lim2)
        b2 = jax.random.uniform(k_b2, (2,), jnp.float32, -lim2, lim2)

        self.w1 = w1.astype(jnp.bfloat16)       # MXU bf16 operand
        self.b1 = b1                             # f32 bias
        self.w2_pad = jnp.zeros((hidden_size, _LANE), jnp.bfloat16
                                ).at[:, :2].set(w2.astype(jnp.bfloat16))
        self.b2_pad = jnp.zeros((1, _LANE), jnp.float32).at[0, :2].set(b2)

    def _encoder_stub(self, input_ids, attention_mask):
        # deterministic stand-in for the RoBERTa encoder:
        # masked embedding lookup -> [2B, block_size, hidden]
        emb = self.embed[input_ids]
        return emb * attention_mask[..., None].astype(jnp.float32)

    def forward(self, input_ids, labels=None):
        # input_ids: [batch, 2*block_size] -> view(-1, block_size)
        input_ids = input_ids.reshape(-1, self.block_size)
        attention_mask = input_ids != 1
        outputs = self._encoder_stub(input_ids, attention_mask)   # [2B, S, H]

        # classifier head input: features[:, 0, :] reshaped to [B, 2H]
        cls = outputs[:, 0, :]                                    # [2B, H]
        x = cls.reshape(-1, 2 * self.hidden_size)                 # [B, 2H]
        n = x.shape[0]

        # pad rows only to the sublane multiple; grid uses cdiv (masked tiles)
        n_pad = _round_up(n, _SUBLANE)
        tm = min(self.tm, n_pad)
        x_p = _pad_rows(x, n_pad).astype(jnp.bfloat16)

        if labels is None:
            logits_slab = _head_infer(x_p, self.w1, self.b1,
                                      self.w2_pad, self.b2_pad,
                                      tm=tm, bf16_tanh=self.bf16_tanh)
            return logits_slab[:n, :2]

        labels2d = _pad_rows(labels.astype(jnp.int32).reshape(-1, 1), n_pad)
        prob_slab, nll_rows = _head_train(
            x_p, self.w1, self.b1, self.w2_pad, self.b2_pad, labels2d,
            tm=tm, bf16_tanh=self.bf16_tanh)
        # CrossEntropyLoss(reduction='mean') over the real rows only.
        loss = jnp.sum(nll_rows[:n, 0]) / jnp.float32(n)
        return loss, prob_slab[:n, :2]


if __name__ == "__main__":
    batch = 2          # number of code-pair examples
    block_size = 8
    hidden = 32
    vocab = 50

    key = jax.random.PRNGKey(0)
    k_model, k_ids, k_lab = jax.random.split(key, 3)

    model = PallasCloneModel(k_model, vocab, hidden, block_size)

    input_ids = jax.random.randint(k_ids, (batch, 2 * block_size), 0, vocab,
                                   dtype=jnp.int32)
    labels = jax.random.randint(k_lab, (batch,), 0, 2, dtype=jnp.int32)

    loss, prob = model.forward(input_ids, labels)
    logits_only = model.forward(input_ids)

    jax.block_until_ready((loss, prob, logits_only))
    print("KERNEL_OK")
</pallas_src>

<mosaic_0001>
module attributes {stable_mosaic.version = 11 : i64} {
  func.func @_k(%arg0: i32, %arg1: memref<8x128xf32, #tpu.memory_space<vmem>>, %arg2: memref<8x128xf32, #tpu.memory_space<vmem>>, %arg3: memref<8x128xf32, #tpu.memory_space<vmem>>) attributes {dimension_semantics = [#tpu.dimension_semantics<arbitrary>], iteration_bounds = array<i64: 2>, scalar_prefetch = 0 : i64, scratch_operands = 0 : i64, tpu.core_type = #tpu.core_type<tc>, window_params = [{pipeline_mode = #tpu.pipeline_mode<synchronous>, transform_indices = @transform_0, window_bounds = array<i64: 8, 128>}, {transform_indices = @transform_1, window_bounds = array<i64: 8, 128>}, {transform_indices = @transform_2, window_bounds = array<i64: 8, 128>}]} {
    %c0 = arith.constant 0 : index
    %c0_0 = arith.constant 0 : index
    %0 = vector.load %arg2[%c0, %c0_0] : memref<8x128xf32, #tpu.memory_space<vmem>>, vector<8x128xf32>
    %c0_1 = arith.constant 0 : index
    %c0_2 = arith.constant 0 : index
    %1 = vector.load %arg1[%c0_1, %c0_2] : memref<8x128xf32, #tpu.memory_space<vmem>>, vector<8x128xf32>
    %2 = arith.addf %0, %1 : vector<8x128xf32>
    %c0_3 = arith.constant 0 : index
    %c0_4 = arith.constant 0 : index
    %3 = vector.load %arg3[%c0_3, %c0_4] : memref<8x128xf32, #tpu.memory_space<vmem>>, vector<8x128xf32>
    tpu.vector_store %arg3[%c0_3, %c0_4], %2 {strides = array<i32>} : memref<8x128xf32, #tpu.memory_space<vmem>>, vector<8x128xf32>,
    return
  }
  func.func @transform_0(%arg0: i32) -> (i32, i32) {
    %c0_i32 = arith.constant 0 : i32
    %c0_i32_0 = arith.constant 0 : i32
    %c0_i32_1 = arith.constant 0 : i32
    return %c0_i32, %c0_i32_0 : i32, i32
  }
  func.func @transform_1(%arg0: i32) -> (i32, i32) {
    %c0_i32 = arith.constant 0 : i32
    %c0_i32_0 = arith.constant 0 : i32
    return %arg0, %c0_i32 : i32, i32
  }
  func.func @transform_2(%arg0: i32) -> (i32, i32) {
    %c0_i32 = arith.constant 0 : i32
    %c0_i32_0 = arith.constant 0 : i32
    return %arg0, %c0_i32 : i32, i32
  }
}

module attributes {stable_mosaic.version = 11 : i64} {
  func.func @_train_kernel(%arg0: i32, %arg1: memref<8x64xbf16, #tpu.memory_space<vmem>>, %arg2: memref<64x32xbf16, #tpu.memory_space<vmem>>, %arg3: memref<1x32xf32, #tpu.memory_space<vmem>>, %arg4: memref<32x128xbf16, #tpu.memory_space<vmem>>, %arg5: memref<1x128xf32, #tpu.memory_space<vmem>>, %arg6: memref<8x1xi32, #tpu.memory_space<vmem>>, %arg7: memref<8x128xf32, #tpu.memory_space<vmem>>, %arg8: memref<8x1xf32, #tpu.memory_space<vmem>>) attributes {dimension_semantics = [#tpu.dimension_semantics<parallel>], iteration_bounds = array<i64: 1>, scalar_prefetch = 0 : i64, scratch_operands = 0 : i64, tpu.core_type = #tpu.core_type<tc>, window_params = [{transform_indices = @transform_0, window_bounds = array<i64: 8, 64>}, {pipeline_mode = #tpu.pipeline_mode<synchronous>, transform_indices = @transform_1, window_bounds = array<i64: 64, 32>}, {pipeline_mode = #tpu.pipeline_mode<synchronous>, transform_indices = @transform_2, window_bounds = array<i64: 1, 32>}, {pipeline_mode = #tpu.pipeline_mode<synchronous>, transform_indices = @transform_3, window_bounds = array<i64: 32, 128>}, {pipeline_mode = #tpu.pipeline_mode<synchronous>, transform_indices = @transform_4, window_bounds = array<i64: 1, 128>}, {transform_indices = @transform_5, window_bounds = array<i64: 8, 1>}, {transform_indices = @transform_6, window_bounds = array<i64: 8, 128>}, {transform_indices = @transform_7, window_bounds = array<i64: 8, 1>}]} {
    %c0 = arith.constant 0 : index
    %c0_0 = arith.constant 0 : index
    %0 = vector.load %arg1[%c0, %c0_0] : memref<8x64xbf16, #tpu.memory_space<vmem>>, vector<8x64xbf16>
    %c0_1 = arith.constant 0 : index
    %c0_2 = arith.constant 0 : index
    %1 = vector.load %arg2[%c0_1, %c0_2] : memref<64x32xbf16, #tpu.memory_space<vmem>>, vector<64x32xbf16>
    %cst = arith.constant dense<0.000000e+00> : vector<8x32xf32>
    %2 = tpu.matmul %0, %1, %cst {dimension_numbers = #tpu.dot_dimension_numbers<[1], [0], [0], [1], [0, 0, 1, 1], [], []>} : vector<8x64xbf16>, vector<64x32xbf16>, vector<8x32xf32> -> vector<8x32xf32>
    %c0_3 = arith.constant 0 : index
    %c0_4 = arith.constant 0 : index
    %3 = vector.load %arg3[%c0_3, %c0_4] : memref<1x32xf32, #tpu.memory_space<vmem>>, vector<1x32xf32>
    %4 = vector.broadcast %3 : vector<1x32xf32> to vector<8x32xf32>
    %5 = arith.addf %2, %4 : vector<8x32xf32>
    %6 = math.tanh %5 : vector<8x32xf32>
    %7 = arith.truncf %6 : vector<8x32xf32> to vector<8x32xbf16>
    %c0_5 = arith.constant 0 : index
    %c0_6 = arith.constant 0 : index
    %8 = vector.load %arg4[%c0_5, %c0_6] : memref<32x128xbf16, #tpu.memory_space<vmem>>, vector<32x128xbf16>
    %cst_7 = arith.constant dense<0.000000e+00> : vector<8x128xf32>
    %9 = tpu.matmul %7, %8, %cst_7 {dimension_numbers = #tpu.dot_dimension_numbers<[1], [0], [0], [1], [0, 0, 1, 1], [], []>} : vector<8x32xbf16>, vector<32x128xbf16>, vector<8x128xf32> -> vector<8x128xf32>
    %c0_8 = arith.constant 0 : index
    %c0_9 = arith.constant 0 : index
    %10 = vector.load %arg5[%c0_8, %c0_9] : memref<1x128xf32, #tpu.memory_space<vmem>>, vector<1x128xf32>
    %11 = vector.broadcast %10 : vector<1x128xf32> to vector<8x128xf32>
    %12 = arith.addf %9, %11 : vector<8x128xf32>
    %13 = tpu.iota {dimensions = array<i32: 1>} : vector<8x128xi32>
    %c0_i32 = arith.constant 0 : i32
    %14 = vector.broadcast %c0_i32 : i32 to vector<8x128xi32>
    %15 = arith.cmpi eq, %13, %14 : vector<8x128xi32>
    %cst_10 = arith.constant 0.000000e+00 : f32
    %16 = vector.broadcast %cst_10 : f32 to vector<8x128xf32>
    %17 = arith.select %15, %12, %16 : vector<8x128xi1>, vector<8x128xf32>
    %cst_11 = arith.constant dense<0.000000e+00> : vector<8xf32>
    %18 = vector.multi_reduction <add>, %17, %cst_11 [1] : vector<8x128xf32> to vector<8xf32>
    %19 = vector.shape_cast %18 : vector<8xf32> to vector<8x1xf32>
    %c1_i32 = arith.constant 1 : i32
    %20 = vector.broadcast %c1_i32 : i32 to vector<8x128xi32>
    %21 = arith.cmpi eq, %13, %20 : vector<8x128xi32>
    %cst_12 = arith.constant 0.000000e+00 : f32
    %22 = vector.broadcast %cst_12 : f32 to vector<8x128xf32>
    %23 = arith.select %21, %12, %22 : vector<8x128xi1>, vector<8x128xf32>
    %cst_13 = arith.constant dense<0.000000e+00> : vector<8xf32>
    %24 = vector.multi_reduction <add>, %23, %cst_13 [1] : vector<8x128xf32> to vector<8xf32>
    %25 = vector.shape_cast %24 : vector<8xf32> to vector<8x1xf32>
    %26 = arith.maximumf %19, %25 : vector<8x1xf32>
    %27 = arith.subf %19, %26 : vector<8x1xf32>
    %28 = math.exp %27 : vector<8x1xf32>
    %29 = arith.subf %25, %26 : vector<8x1xf32>
    %30 = math.exp %29 : vector<8x1xf32>
    %31 = arith.addf %28, %30 : vector<8x1xf32>
    %cst_14 = arith.constant 1.000000e+00 : f32
    %32 = vector.broadcast %cst_14 : f32 to vector<8x1xf32>
    %33 = arith.divf %32, %31 : vector<8x1xf32>
    %34 = arith.mulf %28, %33 : vector<8x1xf32>
    %35 = arith.mulf %30, %33 : vector<8x1xf32>
    %c0_i32_15 = arith.constant 0 : i32
    %36 = vector.broadcast %c0_i32_15 : i32 to vector<8x128xi32>
    %37 = arith.cmpi eq, %13, %36 : vector<8x128xi32>
    %c1_i32_16 = arith.constant 1 : i32
    %38 = vector.broadcast %c1_i32_16 : i32 to vector<8x128xi32>
    %39 = arith.cmpi eq, %13, %38 : vector<8x128xi32>
    %cst_17 = arith.constant 0.000000e+00 : f32
    %40 = vector.shape_cast %35 : vector<8x1xf32> to vector<8x1xf32>
    %41 = vector.broadcast %40 : vector<8x1xf32> to vector<8x128xf32>
    %42 = vector.broadcast %cst_17 : f32 to vector<8x128xf32>
    %43 = arith.select %39, %41, %42 : vector<8x128xi1>, vector<8x128xf32>
    %44 = vector.shape_cast %34 : vector<8x1xf32> to vector<8x1xf32>
    %45 = vector.broadcast %44 : vector<8x1xf32> to vector<8x128xf32>
    %46 = arith.select %37, %45, %43 : vector<8x128xi1>, vector<8x128xf32>
    %c0_18 = arith.constant 0 : index
    %c0_19 = arith.constant 0 : index
    %47 = vector.load %arg7[%c0_18, %c0_19] : memref<8x128xf32, #tpu.memory_space<vmem>>, vector<8x128xf32>
    tpu.vector_store %arg7[%c0_18, %c0_19], %46 {strides = array<i32>} : memref<8x128xf32, #tpu.memory_space<vmem>>, vector<8x128xf32>,
    %48 = math.log %31 : vector<8x1xf32>
    %49 = arith.addf %26, %48 : vector<8x1xf32>
    %c0_20 = arith.constant 0 : index
    %c0_21 = arith.constant 0 : index
    %50 = vector.load %arg6[%c0_20, %c0_21] : memref<8x1xi32, #tpu.memory_space<vmem>>, vector<8x1xi32>
    %c1_i32_22 = arith.constant 1 : i32
    %51 = vector.broadcast %c1_i32_22 : i32 to vector<8x1xi32>
    %52 = arith.cmpi eq, %50, %51 : vector<8x1xi32>
    %53 = arith.select %52, %25, %19 : vector<8x1xi1>, vector<8x1xf32>
    %54 = arith.subf %49, %53 : vector<8x1xf32>
    %c0_23 = arith.constant 0 : index
    %c0_24 = arith.constant 0 : index
    %55 = vector.load %arg8[%c0_23, %c0_24] : memref<8x1xf32, #tpu.memory_space<vmem>>, vector<8x1xf32>
    tpu.vector_store %arg8[%c0_23, %c0_24], %54 {strides = array<i32>} : memref<8x1xf32, #tpu.memory_space<vmem>>, vector<8x1xf32>,
    return
  }
  func.func @transform_0(%arg0: i32) -> (i32, i32) {
    %c0_i32 = arith.constant 0 : i32
    %c0_i32_0 = arith.constant 0 : i32
    return %arg0, %c0_i32 : i32, i32
  }
  func.func @transform_1(%arg0: i32) -> (i32, i32) {
    %c0_i32 = arith.constant 0 : i32
    %c0_i32_0 = arith.constant 0 : i32
    %c0_i32_1 = arith.constant 0 : i32
    return %c0_i32, %c0_i32_0 : i32, i32
  }
  func.func @transform_2(%arg0: i32) -> (i32, i32) {
    %c0_i32 = arith.constant 0 : i32
    %c0_i32_0 = arith.constant 0 : i32
    %c0_i32_1 = arith.constant 0 : i32
    return %c0_i32, %c0_i32_0 : i32, i32
  }
  func.func @transform_3(%arg0: i32) -> (i32, i32) {
    %c0_i32 = arith.constant 0 : i32
    %c0_i32_0 = arith.constant 0 : i32
    %c0_i32_1 = arith.constant 0 : i32
    return %c0_i32, %c0_i32_0 : i32, i32
  }
  func.func @transform_4(%arg0: i32) -> (i32, i32) {
    %c0_i32 = arith.constant 0 : i32
    %c0_i32_0 = arith.constant 0 : i32
    %c0_i32_1 = arith.constant 0 : i32
    return %c0_i32, %c0_i32_0 : i32, i32
  }
  func.func @transform_5(%arg0: i32) -> (i32, i32) {
    %c0_i32 = arith.constant 0 : i32
    %c0_i32_0 = arith.constant 0 : i32
    return %arg0, %c0_i32 : i32, i32
  }
  func.func @transform_6(%arg0: i32) -> (i32, i32) {
    %c0_i32 = arith.constant 0 : i32
    %c0_i32_0 = arith.constant 0 : i32
    return %arg0, %c0_i32 : i32, i32
  }
  func.func @transform_7(%arg0: i32) -> (i32, i32) {
    %c0_i32 = arith.constant 0 : i32
    %c0_i32_0 = arith.constant 0 : i32
    return %arg0, %c0_i32 : i32, i32
  }
}

</mosaic_0001>

<llo_original>
// kernel: tpu_custom_call.1
$region0: #{tpu_custom_call.1}
  #allocation0 [shape = 'u32[]', space=smem, size = 0x4, offset = 0x4, fixed_abs, tag = 'smem constant byte address 0x4 - core index']
  #allocation1 [shape = 'u32[72,128]{1,0:T(1,128)}', space=vmem, size = 0x9000, scoped, tag = 'internal scratch']
  %s0 = inlined_call_operand.hbm [shape: f32[8,128], index: 0, kind: input, shape index: {}]
  %s1 = inlined_call_operand.hbm [shape: f32[16,128], index: 1, kind: input, shape index: {}]
  %s2 = inlined_call_operand.hbm [shape: f32[16,128], index: 2, kind: output, shape index: {}]
  %s3 = sld [smem:[#allocation0]]
  $region49: #{tpu_custom_call.1} parent=0
    _
  %s5 = ssub.s32 1, %s3
  %s6 = scalar_select 0, %s5, %s3
  $region1: #{tpu_custom_call.1} parent=0
    #allocation2 [shape = 'u8[4096]{0}', space=vmem, size = 0x1000, scoped, tag = 'input window, operand 0, single buffered']
    #allocation3 [shape = 's32[2]{0}', space=sflag, size = 0x8, scoped, tag = 'scoped memory for tpu_custom_call.1']
    #allocation4 [shape = 's32[2]{0}', space=sflag, size = 0x8, scoped, tag = 'scoped memory for tpu_custom_call.1']
    #allocation5 [shape = 'u8[8192]{0}', space=vmem, size = 0x2000, scoped, tag = 'input window, operand 1']
    #allocation6 [shape = 's32[2]{0}', space=sflag, size = 0x8, scoped, tag = 'scoped memory for tpu_custom_call.1']
    #allocation7 [shape = 'u8[8192]{0}', space=vmem, size = 0x2000, scoped, tag = 'output window, operand 0']
    %7 = vsyncpa [#allocation3], 0
    %8 = vsyncpa [#allocation6], 0
    %s9 = scalar_lea.sflag [#allocation6], 1
    %10 = vsyncpa %s9, 0
    %11 = vsyncpa [#allocation4], 0
    %s12 = scalar_lea.sflag [#allocation4], 1
    %13 = vsyncpa %s12, 0
    loop: start=0, step=1, limit=4
    $region2: #{tpu_custom_call.1} parent=1 // loop_pre_header
      _
    $region3: #{tpu_custom_call.1} parent=1 // loop_header
      %s15 = sphi 0, %s19
      %p16 = scmp.ge.s32.totalorder %s15, 4
      %s23 = sphi 0, %s23
      %s25 = sphi 0, %s23
      %s26 = sphi 0, %s25
      %s40 = sphi 0, %s26
      %s46 = sphi 0, %s48
      %s49 = sphi 0, %s46
      %s50 = sphi 0, %s49
      %s66 = sphi 0, %s50
      %s72 = sphi 0, %s74
      %s75 = sphi 0, %s72
      %s76 = sphi 0, %s75
      %s92 = sphi 0, %s76
    $region4: #{tpu_custom_call.1} parent=1 // loop_header_branch
      %18 = sbr.rel (%p16) target = $region8
    $region5: #{tpu_custom_call.1} parent=1 // loop_body
      %s20 = ssub.s32 %s15, 1
      %s21 = ssub.s32 %s15, 2
      %s22 = sadd.s32 %s15, 1
      %s24 = sadd.s32 %s23, 1
      %p27 = scmp.eq.s32.totalorder %s15, 1
      %p28 = scmp.ne.s32.totalorder %s23, %s25
      %p29 = scmp.eq.s32.totalorder %s15, 0
      %p30 = por %p28, %p29
      %p31 = scmp.ne.s32.totalorder %s23, %s25
      %p32 = scmp.eq.s32.totalorder %s20, 1
      %p33 = por %p31, %p32
      %p34 = scmp.ne.s32.totalorder %s25, %s26
      %p35 = scmp.eq.s32.totalorder %s20, 0
      %p36 = por %p34, %p35
      %p37 = scmp.ne.s32.totalorder %s25, %s26
      %p38 = scmp.eq.s32.totalorder %s21, 1
      %p39 = por %p37, %p38
      %p41 = scmp.ne.s32.totalorder %s26, %s40
      %p42 = scmp.eq.s32.totalorder %s21, 0
      %p43 = por %p41, %p42
      %s44 = ssub.s32 %s15, %s22
      %p45 = scmp.eq.s32.totalorder %s44, 0
      %s47 = sadd.s32 %s46, 1
      %s48 = scalar_select %p45, %s46, %s47
      %p51 = pneg %p45
      %p52 = scmp.eq.s32.totalorder %s15, 1
      %p53 = por %p51, %p52
      %p54 = scmp.ne.s32.totalorder %s46, %s49
      %p55 = scmp.eq.s32.totalorder %s15, 0
      %p56 = por %p54, %p55
      %p57 = scmp.ne.s32.totalorder %s46, %s49
      %p58 = scmp.eq.s32.totalorder %s20, 1
      %p59 = por %p57, %p58
      %p60 = scmp.ne.s32.totalorder %s49, %s50
      %p61 = scmp.eq.s32.totalorder %s20, 0
      %p62 = por %p60, %p61
      %p63 = scmp.ne.s32.totalorder %s49, %s50
      %p64 = scmp.eq.s32.totalorder %s21, 1
      %p65 = por %p63, %p64
      %p67 = scmp.ne.s32.totalorder %s50, %s66
      %p68 = scmp.eq.s32.totalorder %s21, 0
      %p69 = por %p67, %p68
      %s70 = ssub.s32 %s15, %s22
      %p71 = scmp.eq.s32.totalorder %s70, 0
      %s73 = sadd.s32 %s72, 1
      %s74 = scalar_select %p71, %s72, %s73
      %p77 = pneg %p71
      %p78 = scmp.eq.s32.totalorder %s15, 1
      %p79 = por %p77, %p78
      %p80 = scmp.ne.s32.totalorder %s72, %s75
      %p81 = scmp.eq.s32.totalorder %s15, 0
      %p82 = por %p80, %p81
      %p83 = scmp.ne.s32.totalorder %s72, %s75
      %p84 = scmp.eq.s32.totalorder %s20, 1
      %p85 = por %p83, %p84
      %p86 = scmp.ne.s32.totalorder %s75, %s76
      %p87 = scmp.eq.s32.totalorder %s20, 0
      %p88 = por %p86, %p87
      %p89 = scmp.ne.s32.totalorder %s75, %s76
      %p90 = scmp.eq.s32.totalorder %s21, 1
      %p91 = por %p89, %p90
      %p93 = scmp.ne.s32.totalorder %s76, %s92
      %p94 = scmp.eq.s32.totalorder %s21, 0
      %p95 = por %p93, %p94
      %p96 = scmp.le.s32.totalorder 1, %s15
      %p97 = scmp.lt.s32.totalorder %s15, 3
      %p98 = pnand %p96, %p97
      %p99 = pneg %p98
      // Predicated region
      $region9: #{tpu_custom_call.1} parent=5 // pred_check
        _
      $region10: #{tpu_custom_call.1} parent=5 // pred_check_branch
        %101 = sbr.rel (%p98) target = $region12
      $region11: #{tpu_custom_call.1} parent=5 // pred_region
        %s102 = ssub.s32 %s15, 1
        // Predicated region
        $region13: #{tpu_custom_call.1} parent=11 // pred_check
          %p103 = pneg %p36
        $region14: #{tpu_custom_call.1} parent=11 // pred_check_branch
          %105 = sbr.rel (%p103) target = $region16
        $region15: #{tpu_custom_call.1} parent=11 // pred_region
          %107 = vsyncadd [#allocation3], 0
          %s109 = sshll.u32 %s0, 4
          %s110 = int_to_ptr.hbm [resolvable:$true] %s109
          %s111 = sshll.u32 [#allocation2], 4
          %s112 = int_to_ptr.vmem [resolvable:$true] %s111
          %114 = dma.hbm_to_vmem [thread:$0]  %s110, 128, %s112, [#allocation3]
        $region16: #{tpu_custom_call.1} parent=11 // pred_fallthru
          _
      $region12: #{tpu_custom_call.1} parent=5 // pred_fallthru
        _
      %p115 = scmp.lt.s32.totalorder %s15, 2
      // Predicated region
      $region17: #{tpu_custom_call.1} parent=5 // pred_check
        %p116 = pneg %p115
      $region18: #{tpu_custom_call.1} parent=5 // pred_check_branch
        %118 = sbr.rel (%p116) target = $region20
      $region19: #{tpu_custom_call.1} parent=5 // pred_region
        // Predicated region
        $region21: #{tpu_custom_call.1} parent=19 // pred_check
          %p119 = pneg %p56
        $region22: #{tpu_custom_call.1} parent=19 // pred_check_branch
          %121 = sbr.rel (%p119) target = $region24
        $region23: #{tpu_custom_call.1} parent=19 // pred_region
          %s122 = sand.u32 %s46, 1
          %s123 = scalar_lea.sflag [#allocation6], %s122
          %s124 = sand.u32 %s46, 1
          %s125 = smul.addr %s124, 8
          %s126 = scalar_lea.vmem [#allocation5], %s125
          %128 = vsyncadd %s123, 0
          %s129 = smul.addr %s15, 8
          %s130 = scalar_lea.hbm %s1, %s129
          %s132 = sshll.u32 %s130, 4
          %s133 = int_to_ptr.hbm [resolvable:$true] %s132
          %s134 = sshll.u32 %s126, 4
          %s135 = int_to_ptr.vmem [resolvable:$true] %s134
          %137 = dma.hbm_to_vmem [thread:$0]  %s133, 128, %s135, %s123
        $region24: #{tpu_custom_call.1} parent=19 // pred_fallthru
          _
      $region20: #{tpu_custom_call.1} parent=5 // pred_fallthru
        _
      %p138 = scmp.le.s32.totalorder 1, %s15
      %p139 = scmp.lt.s32.totalorder %s15, 3
      %p140 = pnand %p138, %p139
      %p141 = pneg %p140
      // Predicated region
      $region25: #{tpu_custom_call.1} parent=5 // pred_check
        _
      $region26: #{tpu_custom_call.1} parent=5 // pred_check_branch
        %143 = sbr.rel (%p140) target = $region28
      $region27: #{tpu_custom_call.1} parent=5 // pred_region
        %s144 = ssub.s32 %s15, 1
        // Predicated region
        $region29: #{tpu_custom_call.1} parent=27 // pred_check
          %p145 = pneg %p36
        $region30: #{tpu_custom_call.1} parent=27 // pred_check_branch
          %147 = sbr.rel (%p145) target = $region32
        $region31: #{tpu_custom_call.1} parent=27 // pred_region
          %149 = dma.done [#allocation3], 128
        $region32: #{tpu_custom_call.1} parent=27 // pred_fallthru
          _
        %s150 = sand.u32 %s49, 1
        %s151 = scalar_lea.sflag [#allocation6], %s150
        %s152 = sand.u32 %s49, 1
        %s153 = smul.addr %s152, 8
        %s154 = scalar_lea.vmem [#allocation5], %s153
        // Predicated region
        $region33: #{tpu_custom_call.1} parent=27 // pred_check
          %p155 = pneg %p62
        $region34: #{tpu_custom_call.1} parent=27 // pred_check_branch
          %157 = sbr.rel (%p155) target = $region36
        $region35: #{tpu_custom_call.1} parent=27 // pred_region
          %159 = dma.done %s151, 128
        $region36: #{tpu_custom_call.1} parent=27 // pred_fallthru
          _
        %p160 = pneg %p36
        %p161 = pneg %p33
        %s162 = sand.u32 %s49, 1
        %s163 = scalar_lea.sflag [#allocation6], %s162
        %s164 = sand.u32 %s49, 1
        %s165 = smul.addr %s164, 8
        %s166 = scalar_lea.vmem [#allocation5], %s165
        %p167 = pneg %p62
        %p168 = pneg %p59
        %p169 = pneg %p88
        %p170 = pneg %p85
        %s171 = sand.u32 %s75, 1
        %s172 = scalar_lea.sflag [#allocation4], %s171
        %s173 = sand.u32 %s75, 1
        %s174 = smul.addr %s173, 8
        %s175 = scalar_lea.vmem [#allocation7], %s174
        %v176 = vld [vmem:[%s154] sm:$0xff]
        %v177 = vld [vmem:[#allocation2] sm:$0xff]
        %v178 = vadd.f32 %v176, %v177
        %179 = vst [vmem:[%s175] sm:$0xff] %v178
        %s180 = sand.u32 %s75, 1
        %s181 = scalar_lea.sflag [#allocation4], %s180
        %s182 = sand.u32 %s75, 1
        %s183 = smul.addr %s182, 8
        %s184 = scalar_lea.vmem [#allocation7], %s183
        // Predicated region
        $region37: #{tpu_custom_call.1} parent=27 // pred_check
          %p185 = pneg %p85
        $region38: #{tpu_custom_call.1} parent=27 // pred_check_branch
          %187 = sbr.rel (%p185) target = $region40
        $region39: #{tpu_custom_call.1} parent=27 // pred_region
          %189 = vsyncadd %s181, 0
          %s190 = smul.addr %s20, 8
          %s191 = scalar_lea.hbm %s2, %s190
          %s193 = sshll.u32 %s184, 4
          %s194 = int_to_ptr.vmem [resolvable:$true] %s193
          %s195 = sshll.u32 %s191, 4
          %s196 = int_to_ptr.hbm [resolvable:$true] %s195
          %198 = dma.vmem_to_hbm [thread:$0]  %s194, 128, %s196, %s181
        $region40: #{tpu_custom_call.1} parent=27 // pred_fallthru
          _
      $region28: #{tpu_custom_call.1} parent=5 // pred_fallthru
        _
      %p199 = scmp.le.s32.totalorder 2, %s15
      // Predicated region
      $region41: #{tpu_custom_call.1} parent=5 // pred_check
        %p200 = pneg %p199
      $region42: #{tpu_custom_call.1} parent=5 // pred_check_branch
        %202 = sbr.rel (%p200) target = $region44
      $region43: #{tpu_custom_call.1} parent=5 // pred_region
        %s203 = ssub.s32 %s15, 2
        // Predicated region
        $region45: #{tpu_custom_call.1} parent=43 // pred_check
          %p204 = pneg %p91
        $region46: #{tpu_custom_call.1} parent=43 // pred_check_branch
          %206 = sbr.rel (%p204) target = $region48
        $region47: #{tpu_custom_call.1} parent=43 // pred_region
          %s207 = sand.u32 %s76, 1
          %s208 = scalar_lea.sflag [#allocation4], %s207
          %s209 = sand.u32 %s76, 1
          %s210 = smul.addr %s209, 8
          %s211 = scalar_lea.vmem [#allocation7], %s210
          %213 = dma.done %s208, 128
        $region48: #{tpu_custom_call.1} parent=43 // pred_fallthru
          _
      $region44: #{tpu_custom_call.1} parent=5 // pred_fallthru
        _
    $region6: #{tpu_custom_call.1} parent=1 // loop_footer
      %s19 = sadd.s32 1, %s15
    $region7: #{tpu_custom_call.1} parent=1 // loop_footer_branch
      %14 = sbr.rel target = $region3
    $region8: #{tpu_custom_call.1} parent=1 // loop_exit
      _
    %214 = vsyncpa [#allocation3], 1
    %s215 = scalar_lea.sflag [#allocation3], 1
    %216 = vsyncpa %s215, 1
    %217 = vsyncpa [#allocation6], 1
    %s218 = scalar_lea.sflag [#allocation6], 1
    %219 = vsyncpa %s218, 1
    %220 = vsyncpa [#allocation4], 1
    %s221 = scalar_lea.sflag [#allocation4], 1
    %222 = vsyncpa %s221, 1

// kernel: tpu_custom_call.1
$region0: #{tpu_custom_call.1}
  #allocation0 [shape = 'u32[]', space=smem, size = 0x4, offset = 0x4, fixed_abs, tag = 'smem constant byte address 0x4 - core index']
  #allocation1 [shape = 'u32[72,128]{1,0:T(1,128)}', space=vmem, size = 0x9000, scoped, tag = 'internal scratch']
  %s0 = inlined_call_operand.vmem [shape: bf16[8,64], index: 0, kind: input, shape index: {}]
  %s1 = inlined_call_operand.vmem [shape: bf16[64,32], index: 1, kind: input, shape index: {}]
  %s2 = inlined_call_operand.vmem [shape: f32[1,32], index: 2, kind: input, shape index: {}]
  %s3 = inlined_call_operand.vmem [shape: bf16[32,128], index: 3, kind: input, shape index: {}]
  %s4 = inlined_call_operand.vmem [shape: f32[1,128], index: 4, kind: input, shape index: {}]
  %s5 = inlined_call_operand.vmem [shape: s32[8,1], index: 5, kind: input, shape index: {}]
  %s6 = inlined_call_operand.hbm [shape: f32[8,128], index: 6, kind: output, shape index: {0}]
  %s7 = inlined_call_operand.vmem [shape: f32[8,1], index: 7, kind: output, shape index: {1}]
  %8 = xla_tuple %s6, %s7
  %s9 = sld [smem:[#allocation0]]
  $region42: #{tpu_custom_call.1} parent=0
    _
  %s11 = ssub.s32 1, %s9
  %s12 = scalar_select 0, %s11, %s9
  $region1: #{tpu_custom_call.1} parent=0
    #allocation2 [shape = 'u8[4096]{0}', space=vmem, size = 0x1000, scoped, tag = 'output window, operand 0, single buffered']
    #allocation3 [shape = 's32[1]{0}', space=sflag, size = 0x4, scoped, tag = 'scoped memory for tpu_custom_call.1']
    %13 = vsyncpa [#allocation3], 0
    // Predicated region
    $region2: #{tpu_custom_call.1} parent=1 // pred_check
      _
    $region3: #{tpu_custom_call.1} parent=1 // pred_check_branch
      %15 = sbr.rel (0) target = $region5
    $region4: #{tpu_custom_call.1} parent=1 // pred_region
      _
    $region5: #{tpu_custom_call.1} parent=1 // pred_fallthru
      _
    // Predicated region
    $region6: #{tpu_custom_call.1} parent=1 // pred_check
      _
    $region7: #{tpu_custom_call.1} parent=1 // pred_check_branch
      %17 = sbr.rel (0) target = $region9
    $region8: #{tpu_custom_call.1} parent=1 // pred_region
      _
    $region9: #{tpu_custom_call.1} parent=1 // pred_fallthru
      _
    // Predicated region
    $region10: #{tpu_custom_call.1} parent=1 // pred_check
      _
    $region11: #{tpu_custom_call.1} parent=1 // pred_check_branch
      %19 = sbr.rel (0) target = $region13
    $region12: #{tpu_custom_call.1} parent=1 // pred_region
      _
    $region13: #{tpu_custom_call.1} parent=1 // pred_fallthru
      _
    // Predicated region
    $region14: #{tpu_custom_call.1} parent=1 // pred_check
      _
    $region15: #{tpu_custom_call.1} parent=1 // pred_check_branch
      %21 = sbr.rel (0) target = $region17
    $region16: #{tpu_custom_call.1} parent=1 // pred_region
      _
    $region17: #{tpu_custom_call.1} parent=1 // pred_fallthru
      _
    // Predicated region
    $region18: #{tpu_custom_call.1} parent=1 // pred_check
      _
    $region19: #{tpu_custom_call.1} parent=1 // pred_check_branch
      %23 = sbr.rel (0) target = $region21
    $region20: #{tpu_custom_call.1} parent=1 // pred_region
      _
    $region21: #{tpu_custom_call.1} parent=1 // pred_fallthru
      _
    // Predicated region
    $region22: #{tpu_custom_call.1} parent=1 // pred_check
      _
    $region23: #{tpu_custom_call.1} parent=1 // pred_check_branch
      %25 = sbr.rel (0) target = $region25
    $region24: #{tpu_custom_call.1} parent=1 // pred_region
      _
    $region25: #{tpu_custom_call.1} parent=1 // pred_fallthru
      _
    %v27 = vld [vmem:[%s0] sm:$0xf]
    %v28 = vld [vmem:[%s1] sm:$0xf]
    %v29 = vld [vmem:[%s1 + $0x4] sm:$0xf]
    %v30 = vld [vmem:[%s1 + $0x8] sm:$0xf]
    %v31 = vld [vmem:[%s1 + $0xc] sm:$0xf]
    %v32 = vld [vmem:[%s1 + $0x10] sm:$0xf]
    %v33 = vld [vmem:[%s1 + $0x14] sm:$0xf]
    %v34 = vld [vmem:[%s1 + $0x18] sm:$0xf]
    %v35 = vld [vmem:[%s1 + $0x1c] sm:$0xf]
    %v36 = vld [vmem:[%s2] sm:$0x1]
    %v38 = vperm.slane %v36, 0
    %v48 = vunpack.c.l.b16 %v28
    %v49 = vunpack.c.l.b16 %v29
    %v50 = vunpack.c.l.b16 %v30
    %v51 = vunpack.c.l.b16 %v31
    %v52 = vunpack.c.l.b16 %v32
    %v53 = vunpack.c.l.b16 %v33
    %v54 = vunpack.c.l.b16 %v34
    %v55 = vunpack.c.l.b16 %v35
    %v56 = vpack.c.b16 %v49, %v48
    %v57 = vpack.c.b16 %v51, %v50
    %v58 = vpack.c.b16 %v53, %v52
    %v59 = vpack.c.b16 %v55, %v54
    %vm64 = vcmask 523264
    %v66 = vsel %vm64, %v27, 0
    %68 = vmatpush.bf16.msra.mxu0 0
    %69 = vmatpush.bf16.msra.mxu0 0
    %70 = vmatpush.bf16.msra.mxu0 0
    %71 = vmatpush.bf16.msra.mxu0 0
    %72 = vmatpush.bf16.msra.mxu0 %v59
    %73 = vmatpush.bf16.msra.mxu0 %v58
    %74 = vmatpush.bf16.msra.mxu0 %v57
    %75 = vmatpush.bf16.msra.mxu0 %v56
    %76 = vmatmul.bf16.gmra.mxu0 %v66
    %v77 = vpop.f32.mrf.mxu0
    %v78 = vadd.f32 %v38, %v77
    %v79 = vpop.f32.mrf.mxu0
    %80 = vdwg.mxu0
    %v81 = vtanh.pop %v78
    %v82 = vpack.c.bf16 %v81, %v81
    %v83 = vld [vmem:[%s3] sm:$0xf]
    %v84 = vld [vmem:[%s3 + $0x4] sm:$0xf]
    %v85 = vld [vmem:[%s3 + $0x8] sm:$0xf]
    %v86 = vld [vmem:[%s3 + $0xc] sm:$0xf]
    %v87 = vld [vmem:[%s4] sm:$0x1]
    %v89 = vperm.slane %v87, 0
    %v95 = vunpack.c.l.b16 %v83
    %v96 = vunpack.c.l.b16 %v84
    %v97 = vunpack.c.l.b16 %v85
    %v98 = vunpack.c.l.b16 %v86
    %v99 = vpack.c.b16 %v96, %v95
    %v100 = vpack.c.b16 %v98, %v97
    %vm103 = vcmask 261120
    %v105 = vsel %vm103, %v82, 0
    %107 = vmatpush.bf16.msra.mxu0 0
    %108 = vmatpush.bf16.msra.mxu0 0
    %109 = vmatpush.bf16.msra.mxu0 0
    %110 = vmatpush.bf16.msra.mxu0 0
    %111 = vmatpush.bf16.msra.mxu0 0
    %112 = vmatpush.bf16.msra.mxu0 0
    %113 = vmatpush.bf16.msra.mxu0 %v100
    %114 = vmatpush.bf16.msra.mxu0 %v99
    %115 = vmatmul.bf16.gmra.mxu0 %v105
    %v116 = vpop.f32.mrf.mxu0
    %v117 = vadd.f32 %v89, %v116
    %v118 = vpop.f32.mrf.mxu0
    %119 = vdwg.mxu0
    %v120 = vlaneseq
    %v121 = vand.u32 %v120, 127
    %vm122 = vcmp.eq.s32.totalorder %v121, 0
    %v123 = vsel %vm122, %v117, 0.0
    %124 = vadd.xlane.f32.xlu0 %v123
    %v125 = vpop.xlane.xlu0 %124
    %vm126 = vcmp.eq.s32.totalorder %v121, 1
    %v127 = vsel %vm126, %v117, 0.0
    %128 = vadd.xlane.f32.xlu0 %v127
    %v129 = vpop.xlane.xlu0 %128
    %v130 = vmax.f32 %v125, %v129
    %v131 = vsub.f32 %v125, %v130
    %v132 = vmul.f32 %v131, 1.442695
    %v133 = vpow.pop %v132
    %v134 = vsub.f32 %v129, %v130
    %v135 = vmul.f32 %v134, 1.442695
    %v136 = vpow.pop %v135
    %v137 = vadd.f32 %v133, %v136
    %v138 = vrcp.pop %v137
    %v139 = vmul.f32 %v137, %v138
    %v140 = vsub.f32 1.0, %v139
    %v141 = vmul.f32 %v138, %v140
    %v142 = vadd.f32 %v138, %v141
    %vm143 = vweird.f32 %v137
    %vm144 = vweird.f32 %v138
    %vm145 = vmor %vm143, %vm144
    %v146 = vsel %vm145, %v138, %v142
    %v147 = vand.u32 2147483647, %v137
    %vm148 = vcmp.eq.f32.partialorder %v147, 8.507059e+37
    %v149 = vand.u32 %v137, 2147483648
    %v150 = vor.u32 1.1754944e-38, %v149
    %v151 = vsel %vm148, %v150, %v146
    %v152 = vmul.f32 1.0, %v151
    %v153 = vmul.f32 %v133, %v152
    %v154 = vmul.f32 %v136, %v152
    %v155 = vsel %vm126, %v154, 0.0
    %v156 = vsel %vm122, %v153, %v155
    %157 = vst [vmem:[#allocation2] sm:$0xff] %v156
    %v158 = vlog2.pop %v137
    %v159 = vmul.f32 %v158, 0.6931472
    %v160 = vadd.f32 %v130, %v159
    %v161 = vld [vmem:[%s5] sm:$0xff]
    %vm162 = vcmp.eq.s32.totalorder %v161, 1
    %v163 = vsel %vm162, %v129, %v125
    %v164 = vsub.f32 %v160, %v163
    %vm165 = vcmask 7168
    %166 = vst.msk [vmem:[%s7] sm:$0xff] %vm165, %v164
    // Predicated region
    $region26: #{tpu_custom_call.1} parent=1 // pred_check
      _
    $region27: #{tpu_custom_call.1} parent=1 // pred_check_branch
      %168 = sbr.rel (0) target = $region29
    $region28: #{tpu_custom_call.1} parent=1 // pred_region
      %170 = vsyncadd [#allocation3], 0
      %s172 = sshll.u32 [#allocation2], 4
      %s173 = int_to_ptr.vmem [resolvable:$true] %s172
      %s174 = sshll.u32 %s6, 4
      %s175 = int_to_ptr.hbm [resolvable:$true] %s174
      %177 = dma.vmem_to_hbm [thread:$0]  %s173, 128, %s175, [#allocation3]
    $region29: #{tpu_custom_call.1} parent=1 // pred_fallthru
      _
    // Predicated region
    $region30: #{tpu_custom_call.1} parent=1 // pred_check
      _
    $region31: #{tpu_custom_call.1} parent=1 // pred_check_branch
      %179 = sbr.rel (0) target = $region33
    $region32: #{tpu_custom_call.1} parent=1 // pred_region
      _
    $region33: #{tpu_custom_call.1} parent=1 // pred_fallthru
      _
    // Predicated region
    $region34: #{tpu_custom_call.1} parent=1 // pred_check
      _
    $region35: #{tpu_custom_call.1} parent=1 // pred_check_branch
      %181 = sbr.rel (0) target = $region37
    $region36: #{tpu_custom_call.1} parent=1 // pred_region
      %183 = dma.done [#allocation3], 128
    $region37: #{tpu_custom_call.1} parent=1 // pred_fallthru
      _
    // Predicated region
    $region38: #{tpu_custom_call.1} parent=1 // pred_check
      _
    $region39: #{tpu_custom_call.1} parent=1 // pred_check_branch
      %185 = sbr.rel (0) target = $region41
    $region40: #{tpu_custom_call.1} parent=1 // pred_region
      _
    $region41: #{tpu_custom_call.1} parent=1 // pred_fallthru
      _
    %186 = vsyncpa [#allocation3], 1

</llo_original>
